<compile_context>
chip_gen: v7x
topology: tpu7x:2x2x1
jax: 0.10.0
libtpu: 0.0.40
codegen_flags: <defaults>
</compile_context>

<pallas_src>
import jax
import jax.numpy as jnp
from jax.experimental import pallas as pl
from jax.experimental.pallas import tpu as pltpu

IN_DIM = 28 * 28          # 784 (logical)
IN_PAD = 896              # 7 * 128 lane-aligned input features
H1, H2, H3 = 256, 128, 128
OUT = 10                  # logical number of classes
OUT_PAD = 128             # lane-dense padded class dim
NEG_BIG = -1e30           # drives padded logits to ~ -inf without NaNs

MAX_TB = 512              # batch tile cap (fits default VMEM on all gens)


def _round_up(n, m):
    return ((n + m - 1) // m) * m


def _mlp_kernel(x_ref,
                w1_ref, b1_ref,
                w2_ref, b2_ref,
                w3_ref, b3_ref,
                w4_ref, b4_ref,
                o_ref):
    x = x_ref[...]

    h = jnp.dot(x, w1_ref[...], preferred_element_type=jnp.float32) + b1_ref[...]
    h = jnp.maximum(h, 0.0)

    h = jnp.dot(h, w2_ref[...], preferred_element_type=jnp.float32) + b2_ref[...]
    h = jnp.maximum(h, 0.0)

    h = jnp.dot(h, w3_ref[...], preferred_element_type=jnp.float32) + b3_ref[...]
    h = jnp.maximum(h, 0.0)

    # fc4 over the padded 128-wide class dim; pad lanes get bias NEG_BIG so
    # they contribute exp(~-inf)=0 to the normalizer and never win the max.
    logits = jnp.dot(h, w4_ref[...], preferred_element_type=jnp.float32) + b4_ref[...]

    m = jnp.max(logits, axis=-1, keepdims=True)
    shifted = logits - m
    lse = jnp.log(jnp.sum(jnp.exp(shifted), axis=-1, keepdims=True))
    o_ref[...] = shifted - lse


def network_forward(x, params):
    """x: any shape whose trailing elements reshape to (-1, 784).
    params: dict with padded weights/biases from init_params().
    Returns (B, 10) log-probabilities (float32)."""
    x2d = jnp.reshape(x, (-1, IN_DIM)).astype(jnp.float32)
    B = x2d.shape[0]

    TB = min(MAX_TB, _round_up(B, 8))          # batch tile (multiple of 8)
    B_pad = _round_up(B, TB)
    x_pad = jnp.pad(x2d, ((0, B_pad - B), (0, IN_PAD - IN_DIM)))

    grid = (B_pad // TB,)

    x_spec = pl.BlockSpec((TB, IN_PAD), lambda i: (i, 0))
    out_spec = pl.BlockSpec((TB, OUT_PAD), lambda i: (i, 0))
    const = lambda shape: pl.BlockSpec(shape, lambda i: (0, 0))

    weights = (
        params["w1"], params["b1"],
        params["w2"], params["b2"],
        params["w3"], params["b3"],
        params["w4"], params["b4"],
    )

    out = pl.pallas_call(
        _mlp_kernel,
        out_shape=jax.ShapeDtypeStruct((B_pad, OUT_PAD), jnp.float32),
        grid=grid,
        in_specs=[x_spec] + [const(w.shape) for w in weights],
        out_specs=out_spec,
        compiler_params=pltpu.CompilerParams(
            dimension_semantics=("parallel",)),
    )(x_pad, *weights)

    return out[:B, :OUT]


def init_params(key):
    """Deterministic PyTorch-Linear-style init (uniform +/- 1/sqrt(fan_in)).
    Weights are stored transposed vs. torch, i.e. (in, out), with:
      * w1 zero-padded on the input axis 784 -> 896,
      * w4 zero-padded on the output axis 10 -> 128,
      * b4 pad lanes set to NEG_BIG (acts as -inf in log_softmax)."""
    dims = [(IN_DIM, H1), (H1, H2), (H2, H3), (H3, OUT)]
    params = {}
    for i, (fan_in, fan_out) in enumerate(dims, start=1):
        kw, kb, key = jax.random.split(key, 3)
        bound = 1.0 / jnp.sqrt(float(fan_in))
        w = jax.random.uniform(kw, (fan_in, fan_out), jnp.float32, -bound, bound)
        b = jax.random.uniform(kb, (1, fan_out), jnp.float32, -bound, bound)
        if i == 1:
            w = jnp.pad(w, ((0, IN_PAD - IN_DIM), (0, 0)))          # (896, 256)
        if i == 4:
            w = jnp.pad(w, ((0, 0), (0, OUT_PAD - OUT)))            # (128, 128)
            b = jnp.pad(b, ((0, 0), (0, OUT_PAD - OUT)),
                        constant_values=NEG_BIG)                    # (1, 128)
        params[f"w{i}"] = w
        params[f"b{i}"] = b
    return params


# TODO(synk): `optimize` (SGD steps) and `similarity_loss` are training-time
# host-side logic, not part of the forward pass; only forward() is kernelized.

if __name__ == "__main__":
    key = jax.random.PRNGKey(0)
    pkey, xkey = jax.random.split(key)
    params = init_params(pkey)

    # small MNIST-like batch: (B, 1, 28, 28)
    x = jax.random.normal(xkey, (8, 1, 28, 28), dtype=jnp.float32)

    out = network_forward(x, params)
    out = jax.block_until_ready(out)

    # sanity: log_softmax rows should sum (in prob space) to ~1
    assert out.shape == (8, OUT)
    row_sums = jnp.sum(jnp.exp(out), axis=-1)
    assert bool(jnp.all(jnp.abs(row_sums - 1.0) < 1e-4))

    print("KERNEL_OK")
</pallas_src>

<mosaic_0001>
module attributes {stable_mosaic.version = 11 : i64} {
  func.func @_mlp_kernel(%arg0: i32, %arg1: memref<8x896xf32, #tpu.memory_space<vmem>>, %arg2: memref<896x256xf32, #tpu.memory_space<vmem>>, %arg3: memref<1x256xf32, #tpu.memory_space<vmem>>, %arg4: memref<256x128xf32, #tpu.memory_space<vmem>>, %arg5: memref<1x128xf32, #tpu.memory_space<vmem>>, %arg6: memref<128x128xf32, #tpu.memory_space<vmem>>, %arg7: memref<1x128xf32, #tpu.memory_space<vmem>>, %arg8: memref<128x128xf32, #tpu.memory_space<vmem>>, %arg9: memref<1x128xf32, #tpu.memory_space<vmem>>, %arg10: memref<8x128xf32, #tpu.memory_space<vmem>>) attributes {dimension_semantics = [#tpu.dimension_semantics<parallel>], iteration_bounds = array<i64: 1>, scalar_prefetch = 0 : i64, scratch_operands = 0 : i64, tpu.core_type = #tpu.core_type<tc>, window_params = [{transform_indices = @transform_0, window_bounds = array<i64: 8, 896>}, {pipeline_mode = #tpu.pipeline_mode<synchronous>, transform_indices = @transform_1, window_bounds = array<i64: 896, 256>}, {pipeline_mode = #tpu.pipeline_mode<synchronous>, transform_indices = @transform_2, window_bounds = array<i64: 1, 256>}, {pipeline_mode = #tpu.pipeline_mode<synchronous>, transform_indices = @transform_3, window_bounds = array<i64: 256, 128>}, {pipeline_mode = #tpu.pipeline_mode<synchronous>, transform_indices = @transform_4, window_bounds = array<i64: 1, 128>}, {pipeline_mode = #tpu.pipeline_mode<synchronous>, transform_indices = @transform_5, window_bounds = array<i64: 128, 128>}, {pipeline_mode = #tpu.pipeline_mode<synchronous>, transform_indices = @transform_6, window_bounds = array<i64: 1, 128>}, {pipeline_mode = #tpu.pipeline_mode<synchronous>, transform_indices = @transform_7, window_bounds = array<i64: 128, 128>}, {pipeline_mode = #tpu.pipeline_mode<synchronous>, transform_indices = @transform_8, window_bounds = array<i64: 1, 128>}, {transform_indices = @transform_9, window_bounds = array<i64: 8, 128>}]} {
    %c0 = arith.constant 0 : index
    %c0_0 = arith.constant 0 : index
    %0 = vector.load %arg1[%c0, %c0_0] : memref<8x896xf32, #tpu.memory_space<vmem>>, vector<8x896xf32>
    %c0_1 = arith.constant 0 : index
    %c0_2 = arith.constant 0 : index
    %1 = vector.load %arg2[%c0_1, %c0_2] : memref<896x256xf32, #tpu.memory_space<vmem>>, vector<896x256xf32>
    %cst = arith.constant dense<0.000000e+00> : vector<8x256xf32>
    %2 = tpu.matmul %0, %1, %cst {dimension_numbers = #tpu.dot_dimension_numbers<[1], [0], [0], [1], [0, 0, 1, 1], [], []>} : vector<8x896xf32>, vector<896x256xf32>, vector<8x256xf32> -> vector<8x256xf32>
    %c0_3 = arith.constant 0 : index
    %c0_4 = arith.constant 0 : index
    %3 = vector.load %arg3[%c0_3, %c0_4] : memref<1x256xf32, #tpu.memory_space<vmem>>, vector<1x256xf32>
    %4 = vector.broadcast %3 : vector<1x256xf32> to vector<8x256xf32>
    %5 = arith.addf %2, %4 : vector<8x256xf32>
    %cst_5 = arith.constant 0.000000e+00 : f32
    %6 = vector.broadcast %cst_5 : f32 to vector<8x256xf32>
    %7 = arith.maximumf %5, %6 : vector<8x256xf32>
    %c0_6 = arith.constant 0 : index
    %c0_7 = arith.constant 0 : index
    %8 = vector.load %arg4[%c0_6, %c0_7] : memref<256x128xf32, #tpu.memory_space<vmem>>, vector<256x128xf32>
    %cst_8 = arith.constant dense<0.000000e+00> : vector<8x128xf32>
    %9 = tpu.matmul %7, %8, %cst_8 {dimension_numbers = #tpu.dot_dimension_numbers<[1], [0], [0], [1], [0, 0, 1, 1], [], []>} : vector<8x256xf32>, vector<256x128xf32>, vector<8x128xf32> -> vector<8x128xf32>
    %c0_9 = arith.constant 0 : index
    %c0_10 = arith.constant 0 : index
    %10 = vector.load %arg5[%c0_9, %c0_10] : memref<1x128xf32, #tpu.memory_space<vmem>>, vector<1x128xf32>
    %11 = vector.broadcast %10 : vector<1x128xf32> to vector<8x128xf32>
    %12 = arith.addf %9, %11 : vector<8x128xf32>
    %cst_11 = arith.constant 0.000000e+00 : f32
    %13 = vector.broadcast %cst_11 : f32 to vector<8x128xf32>
    %14 = arith.maximumf %12, %13 : vector<8x128xf32>
    %c0_12 = arith.constant 0 : index
    %c0_13 = arith.constant 0 : index
    %15 = vector.load %arg6[%c0_12, %c0_13] : memref<128x128xf32, #tpu.memory_space<vmem>>, vector<128x128xf32>
    %cst_14 = arith.constant dense<0.000000e+00> : vector<8x128xf32>
    %16 = tpu.matmul %14, %15, %cst_14 {dimension_numbers = #tpu.dot_dimension_numbers<[1], [0], [0], [1], [0, 0, 1, 1], [], []>} : vector<8x128xf32>, vector<128x128xf32>, vector<8x128xf32> -> vector<8x128xf32>
    %c0_15 = arith.constant 0 : index
    %c0_16 = arith.constant 0 : index
    %17 = vector.load %arg7[%c0_15, %c0_16] : memref<1x128xf32, #tpu.memory_space<vmem>>, vector<1x128xf32>
    %18 = vector.broadcast %17 : vector<1x128xf32> to vector<8x128xf32>
    %19 = arith.addf %16, %18 : vector<8x128xf32>
    %cst_17 = arith.constant 0.000000e+00 : f32
    %20 = vector.broadcast %cst_17 : f32 to vector<8x128xf32>
    %21 = arith.maximumf %19, %20 : vector<8x128xf32>
    %c0_18 = arith.constant 0 : index
    %c0_19 = arith.constant 0 : index
    %22 = vector.load %arg8[%c0_18, %c0_19] : memref<128x128xf32, #tpu.memory_space<vmem>>, vector<128x128xf32>
    %cst_20 = arith.constant dense<0.000000e+00> : vector<8x128xf32>
    %23 = tpu.matmul %21, %22, %cst_20 {dimension_numbers = #tpu.dot_dimension_numbers<[1], [0], [0], [1], [0, 0, 1, 1], [], []>} : vector<8x128xf32>, vector<128x128xf32>, vector<8x128xf32> -> vector<8x128xf32>
    %c0_21 = arith.constant 0 : index
    %c0_22 = arith.constant 0 : index
    %24 = vector.load %arg9[%c0_21, %c0_22] : memref<1x128xf32, #tpu.memory_space<vmem>>, vector<1x128xf32>
    %25 = vector.broadcast %24 : vector<1x128xf32> to vector<8x128xf32>
    %26 = arith.addf %23, %25 : vector<8x128xf32>
    %cst_23 = arith.constant dense<0xFF800000> : vector<8xf32>
    %27 = vector.multi_reduction <maximumf>, %26, %cst_23 [1] : vector<8x128xf32> to vector<8xf32>
    %28 = vector.shape_cast %27 : vector<8xf32> to vector<8x1xf32>
    %29 = vector.broadcast %28 : vector<8x1xf32> to vector<8x128xf32>
    %30 = arith.subf %26, %29 : vector<8x128xf32>
    %31 = math.exp %30 : vector<8x128xf32>
    %cst_24 = arith.constant dense<0.000000e+00> : vector<8xf32>
    %32 = vector.multi_reduction <add>, %31, %cst_24 [1] : vector<8x128xf32> to vector<8xf32>
    %33 = vector.shape_cast %32 : vector<8xf32> to vector<8x1xf32>
    %34 = math.log %33 : vector<8x1xf32>
    %35 = vector.broadcast %34 : vector<8x1xf32> to vector<8x128xf32>
    %36 = arith.subf %30, %35 : vector<8x128xf32>
    %c0_25 = arith.constant 0 : index
    %c0_26 = arith.constant 0 : index
    %37 = vector.load %arg10[%c0_25, %c0_26] : memref<8x128xf32, #tpu.memory_space<vmem>>, vector<8x128xf32>
    tpu.vector_store %arg10[%c0_25, %c0_26], %36 {strides = array<i32>} : memref<8x128xf32, #tpu.memory_space<vmem>>, vector<8x128xf32>,
    return
  }
  func.func @transform_0(%arg0: i32) -> (i32, i32) {
    %c0_i32 = arith.constant 0 : i32
    %c0_i32_0 = arith.constant 0 : i32
    return %arg0, %c0_i32 : i32, i32
  }
  func.func @transform_1(%arg0: i32) -> (i32, i32) {
    %c0_i32 = arith.constant 0 : i32
    %c0_i32_0 = arith.constant 0 : i32
    %c0_i32_1 = arith.constant 0 : i32
    return %c0_i32, %c0_i32_0 : i32, i32
  }
  func.func @transform_2(%arg0: i32) -> (i32, i32) {
    %c0_i32 = arith.constant 0 : i32
    %c0_i32_0 = arith.constant 0 : i32
    %c0_i32_1 = arith.constant 0 : i32
    return %c0_i32, %c0_i32_0 : i32, i32
  }
  func.func @transform_3(%arg0: i32) -> (i32, i32) {
    %c0_i32 = arith.constant 0 : i32
    %c0_i32_0 = arith.constant 0 : i32
    %c0_i32_1 = arith.constant 0 : i32
    return %c0_i32, %c0_i32_0 : i32, i32
  }
  func.func @transform_4(%arg0: i32) -> (i32, i32) {
    %c0_i32 = arith.constant 0 : i32
    %c0_i32_0 = arith.constant 0 : i32
    %c0_i32_1 = arith.constant 0 : i32
    return %c0_i32, %c0_i32_0 : i32, i32
  }
  func.func @transform_5(%arg0: i32) -> (i32, i32) {
    %c0_i32 = arith.constant 0 : i32
    %c0_i32_0 = arith.constant 0 : i32
    %c0_i32_1 = arith.constant 0 : i32
    return %c0_i32, %c0_i32_0 : i32, i32
  }
  func.func @transform_6(%arg0: i32) -> (i32, i32) {
    %c0_i32 = arith.constant 0 : i32
    %c0_i32_0 = arith.constant 0 : i32
    %c0_i32_1 = arith.constant 0 : i32
    return %c0_i32, %c0_i32_0 : i32, i32
  }
  func.func @transform_7(%arg0: i32) -> (i32, i32) {
    %c0_i32 = arith.constant 0 : i32
    %c0_i32_0 = arith.constant 0 : i32
    %c0_i32_1 = arith.constant 0 : i32
    return %c0_i32, %c0_i32_0 : i32, i32
  }
  func.func @transform_8(%arg0: i32) -> (i32, i32) {
    %c0_i32 = arith.constant 0 : i32
    %c0_i32_0 = arith.constant 0 : i32
    %c0_i32_1 = arith.constant 0 : i32
    return %c0_i32, %c0_i32_0 : i32, i32
  }
  func.func @transform_9(%arg0: i32) -> (i32, i32) {
    %c0_i32 = arith.constant 0 : i32
    %c0_i32_0 = arith.constant 0 : i32
    return %arg0, %c0_i32 : i32, i32
  }
}

</mosaic_0001>

<llo_original>
// kernel: tpu_custom_call.1
$region0: #{tpu_custom_call.1}
  #allocation0 [shape = 'u32[]', space=smem, size = 0x4, offset = 0x4, fixed_abs, tag = 'smem constant byte address 0x4 - core index']
  #allocation1 [shape = 'u32[144,128]{1,0:T(1,128)}', space=vmem, size = 0x12000, scoped, tag = 'internal scratch']
  %s0 = inlined_call_operand.hbm [shape: f32[8,896], index: 0, kind: input, shape index: {}]
  %s1 = inlined_call_operand.hbm [shape: f32[896,256], index: 1, kind: input, shape index: {}]
  %s2 = inlined_call_operand.vmem [shape: f32[1,256], index: 2, kind: input, shape index: {}]
  %s3 = inlined_call_operand.hbm [shape: f32[256,128], index: 3, kind: input, shape index: {}]
  %s4 = inlined_call_operand.vmem [shape: f32[1,128], index: 4, kind: input, shape index: {}]
  %s5 = inlined_call_operand.hbm [shape: f32[128,128], index: 5, kind: input, shape index: {}]
  %s6 = inlined_call_operand.vmem [shape: f32[1,128], index: 6, kind: input, shape index: {}]
  %s7 = inlined_call_operand.hbm [shape: f32[128,128], index: 7, kind: input, shape index: {}]
  %s8 = inlined_call_operand.vmem [shape: f32[1,128], index: 8, kind: input, shape index: {}]
  %s9 = inlined_call_operand.hbm [shape: f32[8,128], index: 9, kind: output, shape index: {}]
  %s10 = sld [smem:[#allocation0]]
  $region66: #{tpu_custom_call.1} parent=0
    _
  %s12 = ssub.s32 1, %s10
  %s13 = scalar_select 0, %s12, %s10
  $region1: #{tpu_custom_call.1} parent=0
    #allocation2 [shape = 'u8[28672]{0}', space=vmem, size = 0x7000, scoped, tag = 'input window, operand 0, single buffered']
    #allocation3 [shape = 's32[1]{0}', space=sflag, size = 0x4, scoped, tag = 'scoped memory for tpu_custom_call.1']
    #allocation4 [shape = 's32[1]{0}', space=sflag, size = 0x4, scoped, tag = 'scoped memory for tpu_custom_call.1']
    #allocation5 [shape = 'u8[917504]{0}', space=vmem, size = 0xe0000, scoped, tag = 'input window, operand 1, single buffered']
    #allocation6 [shape = 's32[1]{0}', space=sflag, size = 0x4, scoped, tag = 'scoped memory for tpu_custom_call.1']
    #allocation7 [shape = 'u8[131072]{0}', space=vmem, size = 0x20000, scoped, tag = 'input window, operand 3, single buffered']
    #allocation8 [shape = 'u8[65536]{0}', space=vmem, size = 0x10000, scoped, tag = 'input window, operand 5, single buffered']
    #allocation9 [shape = 's32[1]{0}', space=sflag, size = 0x4, scoped, tag = 'scoped memory for tpu_custom_call.1']
    #allocation10 [shape = 'u8[65536]{0}', space=vmem, size = 0x10000, scoped, tag = 'input window, operand 7, single buffered']
    #allocation11 [shape = 'u8[4096]{0}', space=vmem, size = 0x1000, scoped, tag = 'output window, operand 0, single buffered']
    %14 = vsyncpa [#allocation3], 0
    %15 = vsyncpa [#allocation6], 0
    %16 = vsyncpa [#allocation9], 0
    %17 = vsyncpa [#allocation4], 0
    // Predicated region
    $region2: #{tpu_custom_call.1} parent=1 // pred_check
      _
    $region3: #{tpu_custom_call.1} parent=1 // pred_check_branch
      %19 = sbr.rel (0) target = $region5
    $region4: #{tpu_custom_call.1} parent=1 // pred_region
      %s21 = ssub.s32 896, 896
      %22 = vsyncadd [#allocation3], %s21
      %s24 = sshll.u32 [#allocation2], 4
      %s25 = int_to_ptr.vmem [resolvable:$true] %s24
      %27 = dma.hbm_to_vmem [thread:$0]  %s0, 896, %s25, [#allocation3]
    $region5: #{tpu_custom_call.1} parent=1 // pred_fallthru
      _
    // Predicated region
    $region6: #{tpu_custom_call.1} parent=1 // pred_check
      _
    $region7: #{tpu_custom_call.1} parent=1 // pred_check_branch
      %29 = sbr.rel (0) target = $region9
    $region8: #{tpu_custom_call.1} parent=1 // pred_region
      %s31 = ssub.s32 28672, 28672
      %32 = vsyncadd [#allocation6], %s31
      %s33 = sshll.u32 [#allocation5], 4
      %s34 = int_to_ptr.vmem [resolvable:$true] %s33
      %39 = dma.hbm_to_vmem [thread:$0]  %s1, 28672, %s34, [#allocation6], 256, 256, 16
    $region9: #{tpu_custom_call.1} parent=1 // pred_fallthru
      _
    // Predicated region
    $region10: #{tpu_custom_call.1} parent=1 // pred_check
      _
    $region11: #{tpu_custom_call.1} parent=1 // pred_check_branch
      %41 = sbr.rel (0) target = $region13
    $region12: #{tpu_custom_call.1} parent=1 // pred_region
      _
    $region13: #{tpu_custom_call.1} parent=1 // pred_fallthru
      _
    // Predicated region
    $region14: #{tpu_custom_call.1} parent=1 // pred_check
      _
    $region15: #{tpu_custom_call.1} parent=1 // pred_check_branch
      %43 = sbr.rel (0) target = $region17
    $region16: #{tpu_custom_call.1} parent=1 // pred_region
      %s45 = ssub.s32 4096, 4096
      %46 = vsyncadd [#allocation6], %s45
      %s47 = sshll.u32 [#allocation7], 4
      %s48 = int_to_ptr.vmem [resolvable:$true] %s47
      %53 = dma.hbm_to_vmem [thread:$0]  %s3, 4096, %s48, [#allocation6], 128, 128, 8
    $region17: #{tpu_custom_call.1} parent=1 // pred_fallthru
      _
    // Predicated region
    $region18: #{tpu_custom_call.1} parent=1 // pred_check
      _
    $region19: #{tpu_custom_call.1} parent=1 // pred_check_branch
      %55 = sbr.rel (0) target = $region21
    $region20: #{tpu_custom_call.1} parent=1 // pred_region
      _
    $region21: #{tpu_custom_call.1} parent=1 // pred_fallthru
      _
    // Predicated region
    $region22: #{tpu_custom_call.1} parent=1 // pred_check
      _
    $region23: #{tpu_custom_call.1} parent=1 // pred_check_branch
      %57 = sbr.rel (0) target = $region25
    $region24: #{tpu_custom_call.1} parent=1 // pred_region
      %s59 = ssub.s32 2048, 2048
      %60 = vsyncadd [#allocation9], %s59
      %s61 = sshll.u32 [#allocation8], 4
      %s62 = int_to_ptr.vmem [resolvable:$true] %s61
      %67 = dma.hbm_to_vmem [thread:$0]  %s5, 2048, %s62, [#allocation9], 128, 128, 8
    $region25: #{tpu_custom_call.1} parent=1 // pred_fallthru
      _
    // Predicated region
    $region26: #{tpu_custom_call.1} parent=1 // pred_check
      _
    $region27: #{tpu_custom_call.1} parent=1 // pred_check_branch
      %69 = sbr.rel (0) target = $region29
    $region28: #{tpu_custom_call.1} parent=1 // pred_region
      _
    $region29: #{tpu_custom_call.1} parent=1 // pred_fallthru
      _
    // Predicated region
    $region30: #{tpu_custom_call.1} parent=1 // pred_check
      _
    $region31: #{tpu_custom_call.1} parent=1 // pred_check_branch
      %71 = sbr.rel (0) target = $region33
    $region32: #{tpu_custom_call.1} parent=1 // pred_region
      %s73 = ssub.s32 2048, 2048
      %74 = vsyncadd [#allocation9], %s73
      %s75 = sshll.u32 [#allocation10], 4
      %s76 = int_to_ptr.vmem [resolvable:$true] %s75
      %81 = dma.hbm_to_vmem [thread:$0]  %s7, 2048, %s76, [#allocation9], 128, 128, 8
    $region33: #{tpu_custom_call.1} parent=1 // pred_fallthru
      _
    // Predicated region
    $region34: #{tpu_custom_call.1} parent=1 // pred_check
      _
    $region35: #{tpu_custom_call.1} parent=1 // pred_check_branch
      %83 = sbr.rel (0) target = $region37
    $region36: #{tpu_custom_call.1} parent=1 // pred_region
      _
    $region37: #{tpu_custom_call.1} parent=1 // pred_fallthru
      _
    // Predicated region
    $region38: #{tpu_custom_call.1} parent=1 // pred_check
      _
    $region39: #{tpu_custom_call.1} parent=1 // pred_check_branch
      %85 = sbr.rel (0) target = $region41
    $region40: #{tpu_custom_call.1} parent=1 // pred_region
      %86 = dma.done [#allocation3], 896
    $region41: #{tpu_custom_call.1} parent=1 // pred_fallthru
      _
    // Predicated region
    $region42: #{tpu_custom_call.1} parent=1 // pred_check
      _
    $region43: #{tpu_custom_call.1} parent=1 // pred_check_branch
      %88 = sbr.rel (0) target = $region45
    $region44: #{tpu_custom_call.1} parent=1 // pred_region
      %89 = dma.done [#allocation6], 28672
    $region45: #{tpu_custom_call.1} parent=1 // pred_fallthru
      _
    // Predicated region
    $region46: #{tpu_custom_call.1} parent=1 // pred_check
      _
    $region47: #{tpu_custom_call.1} parent=1 // pred_check_branch
      %91 = sbr.rel (0) target = $region49
    $region48: #{tpu_custom_call.1} parent=1 // pred_region
      %92 = dma.done [#allocation6], 4096
    $region49: #{tpu_custom_call.1} parent=1 // pred_fallthru
      _
    // Predicated region
    $region50: #{tpu_custom_call.1} parent=1 // pred_check
      _
    $region51: #{tpu_custom_call.1} parent=1 // pred_check_branch
      %94 = sbr.rel (0) target = $region53
    $region52: #{tpu_custom_call.1} parent=1 // pred_region
      %95 = dma.done [#allocation9], 2048
    $region53: #{tpu_custom_call.1} parent=1 // pred_fallthru
      _
    // Predicated region
    $region54: #{tpu_custom_call.1} parent=1 // pred_check
      _
    $region55: #{tpu_custom_call.1} parent=1 // pred_check_branch
      %97 = sbr.rel (0) target = $region57
    $region56: #{tpu_custom_call.1} parent=1 // pred_region
      %98 = dma.done [#allocation9], 2048
    $region57: #{tpu_custom_call.1} parent=1 // pred_fallthru
      _
    %v99 = vld [vmem:[#allocation2] sm:$0xff]
    %v100 = vld [vmem:[#allocation2 + $0x8] sm:$0xff]
    %v101 = vld [vmem:[#allocation2 + $0x10] sm:$0xff]
    %v102 = vld [vmem:[#allocation2 + $0x18] sm:$0xff]
    %v103 = vld [vmem:[#allocation2 + $0x20] sm:$0xff]
    %v104 = vld [vmem:[#allocation2 + $0x28] sm:$0xff]
    %v105 = vld [vmem:[#allocation2 + $0x30] sm:$0xff]
    %v106 = vld [vmem:[#allocation5] sm:$0xff]
    %v107 = vld [vmem:[#allocation5 + $0x8] sm:$0xff]
    %v108 = vld [vmem:[#allocation5 + $0x10] sm:$0xff]
    %v109 = vld [vmem:[#allocation5 + $0x18] sm:$0xff]
    %v110 = vld [vmem:[#allocation5 + $0x20] sm:$0xff]
    %v111 = vld [vmem:[#allocation5 + $0x28] sm:$0xff]
    %v112 = vld [vmem:[#allocation5 + $0x30] sm:$0xff]
    %v113 = vld [vmem:[#allocation5 + $0x38] sm:$0xff]
    %v114 = vld [vmem:[#allocation5 + $0x40] sm:$0xff]
    %v115 = vld [vmem:[#allocation5 + $0x48] sm:$0xff]
    %v116 = vld [vmem:[#allocation5 + $0x50] sm:$0xff]
    %v117 = vld [vmem:[#allocation5 + $0x58] sm:$0xff]
    %v118 = vld [vmem:[#allocation5 + $0x60] sm:$0xff]
    %v119 = vld [vmem:[#allocation5 + $0x68] sm:$0xff]
    %v120 = vld [vmem:[#allocation5 + $0x70] sm:$0xff]
    %v121 = vld [vmem:[#allocation5 + $0x78] sm:$0xff]
    %v122 = vld [vmem:[#allocation5 + $0x80] sm:$0xff]
    %v123 = vld [vmem:[#allocation5 + $0x88] sm:$0xff]
    %v124 = vld [vmem:[#allocation5 + $0x90] sm:$0xff]
    %v125 = vld [vmem:[#allocation5 + $0x98] sm:$0xff]
    %v126 = vld [vmem:[#allocation5 + $0xa0] sm:$0xff]
    %v127 = vld [vmem:[#allocation5 + $0xa8] sm:$0xff]
    %v128 = vld [vmem:[#allocation5 + $0xb0] sm:$0xff]
    %v129 = vld [vmem:[#allocation5 + $0xb8] sm:$0xff]
    %v130 = vld [vmem:[#allocation5 + $0xc0] sm:$0xff]
    %v131 = vld [vmem:[#allocation5 + $0xc8] sm:$0xff]
    %v132 = vld [vmem:[#allocation5 + $0xd0] sm:$0xff]
    %v133 = vld [vmem:[#allocation5 + $0xd8] sm:$0xff]
    %v134 = vld [vmem:[#allocation5 + $0xe0] sm:$0xff]
    %v135 = vld [vmem:[#allocation5 + $0xe8] sm:$0xff]
    %v136 = vld [vmem:[#allocation5 + $0xf0] sm:$0xff]
    %v137 = vld [vmem:[#allocation5 + $0xf8] sm:$0xff]
    %v138 = vld [vmem:[#allocation5 + $0x100] sm:$0xff]
    %v139 = vld [vmem:[#allocation5 + $0x108] sm:$0xff]
    %v140 = vld [vmem:[#allocation5 + $0x110] sm:$0xff]
    %v141 = vld [vmem:[#allocation5 + $0x118] sm:$0xff]
    %v142 = vld [vmem:[#allocation5 + $0x120] sm:$0xff]
    %v143 = vld [vmem:[#allocation5 + $0x128] sm:$0xff]
    %v144 = vld [vmem:[#allocation5 + $0x130] sm:$0xff]
    %v145 = vld [vmem:[#allocation5 + $0x138] sm:$0xff]
    %v146 = vld [vmem:[#allocation5 + $0x140] sm:$0xff]
    %v147 = vld [vmem:[#allocation5 + $0x148] sm:$0xff]
    %v148 = vld [vmem:[#allocation5 + $0x150] sm:$0xff]
    %v149 = vld [vmem:[#allocation5 + $0x158] sm:$0xff]
    %v150 = vld [vmem:[#allocation5 + $0x160] sm:$0xff]
    %v151 = vld [vmem:[#allocation5 + $0x168] sm:$0xff]
    %v152 = vld [vmem:[#allocation5 + $0x170] sm:$0xff]
    %v153 = vld [vmem:[#allocation5 + $0x178] sm:$0xff]
    %v154 = vld [vmem:[#allocation5 + $0x180] sm:$0xff]
    %v155 = vld [vmem:[#allocation5 + $0x188] sm:$0xff]
    %v156 = vld [vmem:[#allocation5 + $0x190] sm:$0xff]
    %v157 = vld [vmem:[#allocation5 + $0x198] sm:$0xff]
    %v158 = vld [vmem:[#allocation5 + $0x1a0] sm:$0xff]
    %v159 = vld [vmem:[#allocation5 + $0x1a8] sm:$0xff]
    %v160 = vld [vmem:[#allocation5 + $0x1b0] sm:$0xff]
    %v161 = vld [vmem:[#allocation5 + $0x1b8] sm:$0xff]
    %v162 = vld [vmem:[#allocation5 + $0x1c0] sm:$0xff]
    %v163 = vld [vmem:[#allocation5 + $0x1c8] sm:$0xff]
    %v164 = vld [vmem:[#allocation5 + $0x1d0] sm:$0xff]
    %v165 = vld [vmem:[#allocation5 + $0x1d8] sm:$0xff]
    %v166 = vld [vmem:[#allocation5 + $0x1e0] sm:$0xff]
    %v167 = vld [vmem:[#allocation5 + $0x1e8] sm:$0xff]
    %v168 = vld [vmem:[#allocation5 + $0x1f0] sm:$0xff]
    %v169 = vld [vmem:[#allocation5 + $0x1f8] sm:$0xff]
    %v170 = vld [vmem:[#allocation5 + $0x200] sm:$0xff]
    %v171 = vld [vmem:[#allocation5 + $0x208] sm:$0xff]
    %v172 = vld [vmem:[#allocation5 + $0x210] sm:$0xff]
    %v173 = vld [vmem:[#allocation5 + $0x218] sm:$0xff]
    %v174 = vld [vmem:[#allocation5 + $0x220] sm:$0xff]
    %v175 = vld [vmem:[#allocation5 + $0x228] sm:$0xff]
    %v176 = vld [vmem:[#allocation5 + $0x230] sm:$0xff]
    %v177 = vld [vmem:[#allocation5 + $0x238] sm:$0xff]
    %v178 = vld [vmem:[#allocation5 + $0x240] sm:$0xff]
    %v179 = vld [vmem:[#allocation5 + $0x248] sm:$0xff]
    %v180 = vld [vmem:[#allocation5 + $0x250] sm:$0xff]
    %v181 = vld [vmem:[#allocation5 + $0x258] sm:$0xff]
    %v182 = vld [vmem:[#allocation5 + $0x260] sm:$0xff]
    %v183 = vld [vmem:[#allocation5 + $0x268] sm:$0xff]
    %v184 = vld [vmem:[#allocation5 + $0x270] sm:$0xff]
    %v185 = vld [vmem:[#allocation5 + $0x278] sm:$0xff]
    %v186 = vld [vmem:[#allocation5 + $0x280] sm:$0xff]
    %v187 = vld [vmem:[#allocation5 + $0x288] sm:$0xff]
    %v188 = vld [vmem:[#allocation5 + $0x290] sm:$0xff]
    %v189 = vld [vmem:[#allocation5 + $0x298] sm:$0xff]
    %v190 = vld [vmem:[#allocation5 + $0x2a0] sm:$0xff]
    %v191 = vld [vmem:[#allocation5 + $0x2a8] sm:$0xff]
    %v192 = vld [vmem:[#allocation5 + $0x2b0] sm:$0xff]
    %v193 = vld [vmem:[#allocation5 + $0x2b8] sm:$0xff]
    %v194 = vld [vmem:[#allocation5 + $0x2c0] sm:$0xff]
    %v195 = vld [vmem:[#allocation5 + $0x2c8] sm:$0xff]
    %v196 = vld [vmem:[#allocation5 + $0x2d0] sm:$0xff]
    %v197 = vld [vmem:[#allocation5 + $0x2d8] sm:$0xff]
    %v198 = vld [vmem:[#allocation5 + $0x2e0] sm:$0xff]
    %v199 = vld [vmem:[#allocation5 + $0x2e8] sm:$0xff]
    %v200 = vld [vmem:[#allocation5 + $0x2f0] sm:$0xff]
    %v201 = vld [vmem:[#allocation5 + $0x2f8] sm:$0xff]
    %v202 = vld [vmem:[#allocation5 + $0x300] sm:$0xff]
    %v203 = vld [vmem:[#allocation5 + $0x308] sm:$0xff]
    %v204 = vld [vmem:[#allocation5 + $0x310] sm:$0xff]
    %v205 = vld [vmem:[#allocation5 + $0x318] sm:$0xff]
    %v206 = vld [vmem:[#allocation5 + $0x320] sm:$0xff]
    %v207 = vld [vmem:[#allocation5 + $0x328] sm:$0xff]
    %v208 = vld [vmem:[#allocation5 + $0x330] sm:$0xff]
    %v209 = vld [vmem:[#allocation5 + $0x338] sm:$0xff]
    %v210 = vld [vmem:[#allocation5 + $0x340] sm:$0xff]
    %v211 = vld [vmem:[#allocation5 + $0x348] sm:$0xff]
    %v212 = vld [vmem:[#allocation5 + $0x350] sm:$0xff]
    %v213 = vld [vmem:[#allocation5 + $0x358] sm:$0xff]
    %v214 = vld [vmem:[#allocation5 + $0x360] sm:$0xff]
    %v215 = vld [vmem:[#allocation5 + $0x368] sm:$0xff]
    %v216 = vld [vmem:[#allocation5 + $0x370] sm:$0xff]
    %v217 = vld [vmem:[#allocation5 + $0x378] sm:$0xff]
    %v218 = vld [vmem:[#allocation5 + $0x380] sm:$0xff]
    %v219 = vld [vmem:[#allocation5 + $0x388] sm:$0xff]
    %v220 = vld [vmem:[#allocation5 + $0x390] sm:$0xff]
    %v221 = vld [vmem:[#allocation5 + $0x398] sm:$0xff]
    %v222 = vld [vmem:[#allocation5 + $0x3a0] sm:$0xff]
    %v223 = vld [vmem:[#allocation5 + $0x3a8] sm:$0xff]
    %v224 = vld [vmem:[#allocation5 + $0x3b0] sm:$0xff]
    %v225 = vld [vmem:[#allocation5 + $0x3b8] sm:$0xff]
    %v226 = vld [vmem:[#allocation5 + $0x3c0] sm:$0xff]
    %v227 = vld [vmem:[#allocation5 + $0x3c8] sm:$0xff]
    %v228 = vld [vmem:[#allocation5 + $0x3d0] sm:$0xff]
    %v229 = vld [vmem:[#allocation5 + $0x3d8] sm:$0xff]
    %v230 = vld [vmem:[#allocation5 + $0x3e0] sm:$0xff]
    %v231 = vld [vmem:[#allocation5 + $0x3e8] sm:$0xff]
    %v232 = vld [vmem:[#allocation5 + $0x3f0] sm:$0xff]
    %v233 = vld [vmem:[#allocation5 + $0x3f8] sm:$0xff]
    %v234 = vld [vmem:[#allocation5 + $0x400] sm:$0xff]
    %v235 = vld [vmem:[#allocation5 + $0x408] sm:$0xff]
    %v236 = vld [vmem:[#allocation5 + $0x410] sm:$0xff]
    %v237 = vld [vmem:[#allocation5 + $0x418] sm:$0xff]
    %v238 = vld [vmem:[#allocation5 + $0x420] sm:$0xff]
    %v239 = vld [vmem:[#allocation5 + $0x428] sm:$0xff]
    %v240 = vld [vmem:[#allocation5 + $0x430] sm:$0xff]
    %v241 = vld [vmem:[#allocation5 + $0x438] sm:$0xff]
    %v242 = vld [vmem:[#allocation5 + $0x440] sm:$0xff]
    %v243 = vld [vmem:[#allocation5 + $0x448] sm:$0xff]
    %v244 = vld [vmem:[#allocation5 + $0x450] sm:$0xff]
    %v245 = vld [vmem:[#allocation5 + $0x458] sm:$0xff]
    %v246 = vld [vmem:[#allocation5 + $0x460] sm:$0xff]
    %v247 = vld [vmem:[#allocation5 + $0x468] sm:$0xff]
    %v248 = vld [vmem:[#allocation5 + $0x470] sm:$0xff]
    %v249 = vld [vmem:[#allocation5 + $0x478] sm:$0xff]
    %v250 = vld [vmem:[#allocation5 + $0x480] sm:$0xff]
    %v251 = vld [vmem:[#allocation5 + $0x488] sm:$0xff]
    %v252 = vld [vmem:[#allocation5 + $0x490] sm:$0xff]
    %v253 = vld [vmem:[#allocation5 + $0x498] sm:$0xff]
    %v254 = vld [vmem:[#allocation5 + $0x4a0] sm:$0xff]
    %v255 = vld [vmem:[#allocation5 + $0x4a8] sm:$0xff]
    %v256 = vld [vmem:[#allocation5 + $0x4b0] sm:$0xff]
    %v257 = vld [vmem:[#allocation5 + $0x4b8] sm:$0xff]
    %v258 = vld [vmem:[#allocation5 + $0x4c0] sm:$0xff]
    %v259 = vld [vmem:[#allocation5 + $0x4c8] sm:$0xff]
    %v260 = vld [vmem:[#allocation5 + $0x4d0] sm:$0xff]
    %v261 = vld [vmem:[#allocation5 + $0x4d8] sm:$0xff]
    %v262 = vld [vmem:[#allocation5 + $0x4e0] sm:$0xff]
    %v263 = vld [vmem:[#allocation5 + $0x4e8] sm:$0xff]
    %v264 = vld [vmem:[#allocation5 + $0x4f0] sm:$0xff]
    %v265 = vld [vmem:[#allocation5 + $0x4f8] sm:$0xff]
    %v266 = vld [vmem:[#allocation5 + $0x500] sm:$0xff]
    %v267 = vld [vmem:[#allocation5 + $0x508] sm:$0xff]
    %v268 = vld [vmem:[#allocation5 + $0x510] sm:$0xff]
    %v269 = vld [vmem:[#allocation5 + $0x518] sm:$0xff]
    %v270 = vld [vmem:[#allocation5 + $0x520] sm:$0xff]
    %v271 = vld [vmem:[#allocation5 + $0x528] sm:$0xff]
    %v272 = vld [vmem:[#allocation5 + $0x530] sm:$0xff]
    %v273 = vld [vmem:[#allocation5 + $0x538] sm:$0xff]
    %v274 = vld [vmem:[#allocation5 + $0x540] sm:$0xff]
    %v275 = vld [vmem:[#allocation5 + $0x548] sm:$0xff]
    %v276 = vld [vmem:[#allocation5 + $0x550] sm:$0xff]
    %v277 = vld [vmem:[#allocation5 + $0x558] sm:$0xff]
    %v278 = vld [vmem:[#allocation5 + $0x560] sm:$0xff]
    %v279 = vld [vmem:[#allocation5 + $0x568] sm:$0xff]
    %v280 = vld [vmem:[#allocation5 + $0x570] sm:$0xff]
    %v281 = vld [vmem:[#allocation5 + $0x578] sm:$0xff]
    %v282 = vld [vmem:[#allocation5 + $0x580] sm:$0xff]
    %v283 = vld [vmem:[#allocation5 + $0x588] sm:$0xff]
    %v284 = vld [vmem:[#allocation5 + $0x590] sm:$0xff]
    %v285 = vld [vmem:[#allocation5 + $0x598] sm:$0xff]
    %v286 = vld [vmem:[#allocation5 + $0x5a0] sm:$0xff]
    %v287 = vld [vmem:[#allocation5 + $0x5a8] sm:$0xff]
    %v288 = vld [vmem:[#allocation5 + $0x5b0] sm:$0xff]
    %v289 = vld [vmem:[#allocation5 + $0x5b8] sm:$0xff]
    %v290 = vld [vmem:[#allocation5 + $0x5c0] sm:$0xff]
    %v291 = vld [vmem:[#allocation5 + $0x5c8] sm:$0xff]
    %v292 = vld [vmem:[#allocation5 + $0x5d0] sm:$0xff]
    %v293 = vld [vmem:[#allocation5 + $0x5d8] sm:$0xff]
    %v294 = vld [vmem:[#allocation5 + $0x5e0] sm:$0xff]
    %v295 = vld [vmem:[#allocation5 + $0x5e8] sm:$0xff]
    %v296 = vld [vmem:[#allocation5 + $0x5f0] sm:$0xff]
    %v297 = vld [vmem:[#allocation5 + $0x5f8] sm:$0xff]
    %v298 = vld [vmem:[#allocation5 + $0x600] sm:$0xff]
    %v299 = vld [vmem:[#allocation5 + $0x608] sm:$0xff]
    %v300 = vld [vmem:[#allocation5 + $0x610] sm:$0xff]
    %v301 = vld [vmem:[#allocation5 + $0x618] sm:$0xff]
    %v302 = vld [vmem:[#allocation5 + $0x620] sm:$0xff]
    %v303 = vld [vmem:[#allocation5 + $0x628] sm:$0xff]
    %v304 = vld [vmem:[#allocation5 + $0x630] sm:$0xff]
    %v305 = vld [vmem:[#allocation5 + $0x638] sm:$0xff]
    %v306 = vld [vmem:[#allocation5 + $0x640] sm:$0xff]
    %v307 = vld [vmem:[#allocation5 + $0x648] sm:$0xff]
    %v308 = vld [vmem:[#allocation5 + $0x650] sm:$0xff]
    %v309 = vld [vmem:[#allocation5 + $0x658] sm:$0xff]
    %v310 = vld [vmem:[#allocation5 + $0x660] sm:$0xff]
    %v311 = vld [vmem:[#allocation5 + $0x668] sm:$0xff]
    %v312 = vld [vmem:[#allocation5 + $0x670] sm:$0xff]
    %v313 = vld [vmem:[#allocation5 + $0x678] sm:$0xff]
    %v314 = vld [vmem:[#allocation5 + $0x680] sm:$0xff]
    %v315 = vld [vmem:[#allocation5 + $0x688] sm:$0xff]
    %v316 = vld [vmem:[#allocation5 + $0x690] sm:$0xff]
    %v317 = vld [vmem:[#allocation5 + $0x698] sm:$0xff]
    %v318 = vld [vmem:[#allocation5 + $0x6a0] sm:$0xff]
    %v319 = vld [vmem:[#allocation5 + $0x6a8] sm:$0xff]
    %v320 = vld [vmem:[#allocation5 + $0x6b0] sm:$0xff]
    %v321 = vld [vmem:[#allocation5 + $0x6b8] sm:$0xff]
    %v322 = vld [vmem:[#allocation5 + $0x6c0] sm:$0xff]
    %v323 = vld [vmem:[#allocation5 + $0x6c8] sm:$0xff]
    %v324 = vld [vmem:[#allocation5 + $0x6d0] sm:$0xff]
    %v325 = vld [vmem:[#allocation5 + $0x6d8] sm:$0xff]
    %v326 = vld [vmem:[#allocation5 + $0x6e0] sm:$0xff]
    %v327 = vld [vmem:[#allocation5 + $0x6e8] sm:$0xff]
    %v328 = vld [vmem:[#allocation5 + $0x6f0] sm:$0xff]
    %v329 = vld [vmem:[#allocation5 + $0x6f8] sm:$0xff]
    %v330 = vld [vmem:[%s2] sm:$0x3]
    %v332 = vlaneseq
    %v333 = vshrl.u32 %v332, 7
    %v334 = vsub.s32 0, %v333
    %v335 = vrot.slane %v330, %v334
    %v336 = vlaneseq
    %v337 = vshrl.u32 %v336, 7
    %v338 = vsub.s32 1, %v337
    %v339 = vrot.slane %v330, %v338
    %342 = vmatprep.subr.mxu0 %v107
    %343 = vmatpush1.msra.mxu0 %v106
    %344 = vmatprep.subr.mxu0 %v109
    %345 = vmatpush1.msra.mxu0 %v108
    %346 = vmatprep.subr.mxu0 %v111
    %347 = vmatpush1.msra.mxu0 %v110
    %348 = vmatprep.subr.mxu0 %v113
    %349 = vmatpush1.msra.mxu0 %v112
    %350 = vmatprep.subr.mxu0 %v115
    %351 = vmatpush1.msra.mxu0 %v114
    %352 = vmatprep.subr.mxu0 %v117
    %353 = vmatpush1.msra.mxu0 %v116
    %354 = vmatprep.subr.mxu0 %v119
    %355 = vmatpush1.msra.mxu0 %v118
    %356 = vmatprep.subr.mxu0 %v121
    %357 = vmatpush1.msra.mxu0 %v120
    %358 = vmatprep.subr.mxu0 %v123
    %359 = vmatpush1.msra.mxu0 %v122
    %360 = vmatprep.subr.mxu0 %v125
    %361 = vmatpush1.msra.mxu0 %v124
    %362 = vmatprep.subr.mxu0 %v127
    %363 = vmatpush1.msra.mxu0 %v126
    %364 = vmatprep.subr.mxu0 %v129
    %365 = vmatpush1.msra.mxu0 %v128
    %366 = vmatprep.subr.mxu0 %v131
    %367 = vmatpush1.msra.mxu0 %v130
    %368 = vmatprep.subr.mxu0 %v133
    %369 = vmatpush1.msra.mxu0 %v132
    %370 = vmatprep.subr.mxu0 %v135
    %371 = vmatpush1.msra.mxu0 %v134
    %372 = vmatprep.subr.mxu0 %v137
    %373 = vmatpush1.msra.mxu0 %v136
    %374 = vmatprep.subr.mxu0 %v139
    %375 = vmatpush1.msra.mxu0 %v138
    %376 = vmatprep.subr.mxu0 %v141
    %377 = vmatpush1.msra.mxu0 %v140
    %378 = vmatprep.subr.mxu0 %v143
    %379 = vmatpush1.msra.mxu0 %v142
    %380 = vmatprep.subr.mxu0 %v145
    %381 = vmatpush1.msra.mxu0 %v144
    %382 = vmatprep.subr.mxu0 %v147
    %383 = vmatpush1.msra.mxu0 %v146
    %384 = vmatprep.subr.mxu0 %v149
    %385 = vmatpush1.msra.mxu0 %v148
    %386 = vmatprep.subr.mxu0 %v151
    %387 = vmatpush1.msra.mxu0 %v150
    %388 = vmatprep.subr.mxu0 %v153
    %389 = vmatpush1.msra.mxu0 %v152
    %390 = vmatprep.subr.mxu0 %v155
    %391 = vmatpush1.msra.mxu0 %v154
    %392 = vmatprep.subr.mxu0 %v157
    %393 = vmatpush1.msra.mxu0 %v156
    %394 = vmatprep.subr.mxu0 %v159
    %395 = vmatpush1.msra.mxu0 %v158
    %396 = vmatprep.subr.mxu0 %v161
    %397 = vmatpush1.msra.mxu0 %v160
    %398 = vmatprep.subr.mxu0 %v163
    %399 = vmatpush1.msra.mxu0 %v162
    %400 = vmatprep.subr.mxu0 %v165
    %401 = vmatpush1.msra.mxu0 %v164
    %402 = vmatprep.subr.mxu0 %v167
    %403 = vmatpush1.msra.mxu0 %v166
    %404 = vmatprep.subr.mxu0 %v169
    %405 = vmatpush1.msra.mxu0 %v168
    %406 = vmatprep.mubr.f32.mxu0 %v100
    %407 = vmatmul.mubr.f32.gmra.mrb[0].mxu0 %v99
    %v408 = vpop.f32.mrb[0].mxu0
    %v409 = vadd.f32 %v335, %v408
    %v410 = vpop.f32.mrb[0].mxu0
    %v411 = vadd.f32 %v339, %v410
    %412 = vdwg.mxu0
    %413 = vmatprep.subr.mxu0 %v171
    %414 = vmatpush1.msra.mxu0 %v170
    %415 = vmatprep.subr.mxu0 %v173
    %416 = vmatpush1.msra.mxu0 %v172
    %417 = vmatprep.subr.mxu0 %v175
    %418 = vmatpush1.msra.mxu0 %v174
    %419 = vmatprep.subr.mxu0 %v177
    %420 = vmatpush1.msra.mxu0 %v176
    %421 = vmatprep.subr.mxu0 %v179
    %422 = vmatpush1.msra.mxu0 %v178
    %423 = vmatprep.subr.mxu0 %v181
    %424 = vmatpush1.msra.mxu0 %v180
    %425 = vmatprep.subr.mxu0 %v183
    %426 = vmatpush1.msra.mxu0 %v182
    %427 = vmatprep.subr.mxu0 %v185
    %428 = vmatpush1.msra.mxu0 %v184
    %429 = vmatprep.subr.mxu0 %v187
    %430 = vmatpush1.msra.mxu0 %v186
    %431 = vmatprep.subr.mxu0 %v189
    %432 = vmatpush1.msra.mxu0 %v188
    %433 = vmatprep.subr.mxu0 %v191
    %434 = vmatpush1.msra.mxu0 %v190
    %435 = vmatprep.subr.mxu0 %v193
    %436 = vmatpush1.msra.mxu0 %v192
    %437 = vmatprep.subr.mxu0 %v195
    %438 = vmatpush1.msra.mxu0 %v194
    %439 = vmatprep.subr.mxu0 %v197
    %440 = vmatpush1.msra.mxu0 %v196
    %441 = vmatprep.subr.mxu0 %v199
    %442 = vmatpush1.msra.mxu0 %v198
    %443 = vmatprep.subr.mxu0 %v201
    %444 = vmatpush1.msra.mxu0 %v200
    %445 = vmatprep.subr.mxu0 %v203
    %446 = vmatpush1.msra.mxu0 %v202
    %447 = vmatprep.subr.mxu0 %v205
    %448 = vmatpush1.msra.mxu0 %v204
    %449 = vmatprep.subr.mxu0 %v207
    %450 = vmatpush1.msra.mxu0 %v206
    %451 = vmatprep.subr.mxu0 %v209
    %452 = vmatpush1.msra.mxu0 %v208
    %453 = vmatprep.subr.mxu0 %v211
    %454 = vmatpush1.msra.mxu0 %v210
    %455 = vmatprep.subr.mxu0 %v213
    %456 = vmatpush1.msra.mxu0 %v212
    %457 = vmatprep.subr.mxu0 %v215
    %458 = vmatpush1.msra.mxu0 %v214
    %459 = vmatprep.subr.mxu0 %v217
    %460 = vmatpush1.msra.mxu0 %v216
    %461 = vmatprep.subr.mxu0 %v219
    %462 = vmatpush1.msra.mxu0 %v218
    %463 = vmatprep.subr.mxu0 %v221
    %464 = vmatpush1.msra.mxu0 %v220
    %465 = vmatprep.subr.mxu0 %v223
    %466 = vmatpush1.msra.mxu0 %v222
    %467 = vmatprep.subr.mxu0 %v225
    %468 = vmatpush1.msra.mxu0 %v224
    %469 = vmatprep.subr.mxu0 %v227
    %470 = vmatpush1.msra.mxu0 %v226
    %471 = vmatprep.subr.mxu0 %v229
    %472 = vmatpush1.msra.mxu0 %v228
    %473 = vmatprep.subr.mxu0 %v231
    %474 = vmatpush1.msra.mxu0 %v230
    %475 = vmatprep.subr.mxu0 %v233
    %476 = vmatpush1.msra.mxu0 %v232
    %477 = vmatprep.mubr.f32.mxu0 %v102
    %478 = vmatmul.mubr.f32.gmra.mrb[0].mxu0 %v101
    %v479 = vpop.f32.mrb[0].mxu0
    %v480 = vadd.f32 %v409, %v479
    %v481 = vpop.f32.mrb[0].mxu0
    %v482 = vadd.f32 %v411, %v481
    %483 = vdwg.mxu0
    %484 = vmatprep.subr.mxu0 %v235
    %485 = vmatpush1.msra.mxu0 %v234
    %486 = vmatprep.subr.mxu0 %v237
    %487 = vmatpush1.msra.mxu0 %v236
    %488 = vmatprep.subr.mxu0 %v239
    %489 = vmatpush1.msra.mxu0 %v238
    %490 = vmatprep.subr.mxu0 %v241
    %491 = vmatpush1.msra.mxu0 %v240
    %492 = vmatprep.subr.mxu0 %v243
    %493 = vmatpush1.msra.mxu0 %v242
    %494 = vmatprep.subr.mxu0 %v245
    %495 = vmatpush1.msra.mxu0 %v244
    %496 = vmatprep.subr.mxu0 %v247
    %497 = vmatpush1.msra.mxu0 %v246
    %498 = vmatprep.subr.mxu0 %v249
    %499 = vmatpush1.msra.mxu0 %v248
    %500 = vmatprep.subr.mxu0 %v251
    %501 = vmatpush1.msra.mxu0 %v250
    %502 = vmatprep.subr.mxu0 %v253
    %503 = vmatpush1.msra.mxu0 %v252
    %504 = vmatprep.subr.mxu0 %v255
    %505 = vmatpush1.msra.mxu0 %v254
    %506 = vmatprep.subr.mxu0 %v257
    %507 = vmatpush1.msra.mxu0 %v256
    %508 = vmatprep.subr.mxu0 %v259
    %509 = vmatpush1.msra.mxu0 %v258
    %510 = vmatprep.subr.mxu0 %v261
    %511 = vmatpush1.msra.mxu0 %v260
    %512 = vmatprep.subr.mxu0 %v263
    %513 = vmatpush1.msra.mxu0 %v262
    %514 = vmatprep.subr.mxu0 %v265
    %515 = vmatpush1.msra.mxu0 %v264
    %516 = vmatprep.subr.mxu0 %v267
    %517 = vmatpush1.msra.mxu0 %v266
    %518 = vmatprep.subr.mxu0 %v269
    %519 = vmatpush1.msra.mxu0 %v268
    %520 = vmatprep.subr.mxu0 %v271
    %521 = vmatpush1.msra.mxu0 %v270
    %522 = vmatprep.subr.mxu0 %v273
    %523 = vmatpush1.msra.mxu0 %v272
    %524 = vmatprep.subr.mxu0 %v275
    %525 = vmatpush1.msra.mxu0 %v274
    %526 = vmatprep.subr.mxu0 %v277
    %527 = vmatpush1.msra.mxu0 %v276
    %528 = vmatprep.subr.mxu0 %v279
    %529 = vmatpush1.msra.mxu0 %v278
    %530 = vmatprep.subr.mxu0 %v281
    %531 = vmatpush1.msra.mxu0 %v280
    %532 = vmatprep.subr.mxu0 %v283
    %533 = vmatpush1.msra.mxu0 %v282
    %534 = vmatprep.subr.mxu0 %v285
    %535 = vmatpush1.msra.mxu0 %v284
    %536 = vmatprep.subr.mxu0 %v287
    %537 = vmatpush1.msra.mxu0 %v286
    %538 = vmatprep.subr.mxu0 %v289
    %539 = vmatpush1.msra.mxu0 %v288
    %540 = vmatprep.subr.mxu0 %v291
    %541 = vmatpush1.msra.mxu0 %v290
    %542 = vmatprep.subr.mxu0 %v293
    %543 = vmatpush1.msra.mxu0 %v292
    %544 = vmatprep.subr.mxu0 %v295
    %545 = vmatpush1.msra.mxu0 %v294
    %546 = vmatprep.subr.mxu0 %v297
    %547 = vmatpush1.msra.mxu0 %v296
    %548 = vmatprep.mubr.f32.mxu0 %v104
    %549 = vmatmul.mubr.f32.gmra.mrb[0].mxu0 %v103
    %v550 = vpop.f32.mrb[0].mxu0
    %v551 = vadd.f32 %v480, %v550
    %v552 = vpop.f32.mrb[0].mxu0
    %v553 = vadd.f32 %v482, %v552
    %554 = vdwg.mxu0
    %555 = vmatprep.subr.mxu0 %v299
    %556 = vmatpush1.msra.mxu0 %v298
    %557 = vmatprep.subr.mxu0 %v301
    %558 = vmatpush1.msra.mxu0 %v300
    %559 = vmatprep.subr.mxu0 %v303
    %560 = vmatpush1.msra.mxu0 %v302
    %561 = vmatprep.subr.mxu0 %v305
    %562 = vmatpush1.msra.mxu0 %v304
    %563 = vmatprep.subr.mxu0 %v307
    %564 = vmatpush1.msra.mxu0 %v306
    %565 = vmatprep.subr.mxu0 %v309
    %566 = vmatpush1.msra.mxu0 %v308
    %567 = vmatprep.subr.mxu0 %v311
    %568 = vmatpush1.msra.mxu0 %v310
    %569 = vmatprep.subr.mxu0 %v313
    %570 = vmatpush1.msra.mxu0 %v312
    %571 = vmatprep.subr.mxu0 %v315
    %572 = vmatpush1.msra.mxu0 %v314
    %573 = vmatprep.subr.mxu0 %v317
    %574 = vmatpush1.msra.mxu0 %v316
    %575 = vmatprep.subr.mxu0 %v319
    %576 = vmatpush1.msra.mxu0 %v318
    %577 = vmatprep.subr.mxu0 %v321
    %578 = vmatpush1.msra.mxu0 %v320
    %579 = vmatprep.subr.mxu0 %v323
    %580 = vmatpush1.msra.mxu0 %v322
    %581 = vmatprep.subr.mxu0 %v325
    %582 = vmatpush1.msra.mxu0 %v324
    %583 = vmatprep.subr.mxu0 %v327
    %584 = vmatpush1.msra.mxu0 %v326
    %585 = vmatprep.subr.mxu0 %v329
    %586 = vmatpush1.msra.mxu0 %v328
    %587 = vmatprep.subr.mxu0 0.0
    %588 = vmatpush1.msra.mxu0 0.0
    %589 = vmatprep.subr.mxu0 0.0
    %590 = vmatpush1.msra.mxu0 0.0
    %591 = vmatprep.subr.mxu0 0.0
    %592 = vmatpush1.msra.mxu0 0.0
    %593 = vmatprep.subr.mxu0 0.0
    %594 = vmatpush1.msra.mxu0 0.0
    %595 = vmatprep.subr.mxu0 0.0
    %596 = vmatpush1.msra.mxu0 0.0
    %597 = vmatprep.subr.mxu0 0.0
    %598 = vmatpush1.msra.mxu0 0.0
    %599 = vmatprep.subr.mxu0 0.0
    %600 = vmatpush1.msra.mxu0 0.0
    %601 = vmatprep.subr.mxu0 0.0
    %602 = vmatpush1.msra.mxu0 0.0
    %603 = vmatprep.subr.mxu0 0.0
    %604 = vmatpush1.msra.mxu0 0.0
    %605 = vmatprep.subr.mxu0 0.0
    %606 = vmatpush1.msra.mxu0 0.0
    %607 = vmatprep.subr.mxu0 0.0
    %608 = vmatpush1.msra.mxu0 0.0
    %609 = vmatprep.subr.mxu0 0.0
    %610 = vmatpush1.msra.mxu0 0.0
    %611 = vmatprep.subr.mxu0 0.0
    %612 = vmatpush1.msra.mxu0 0.0
    %613 = vmatprep.subr.mxu0 0.0
    %614 = vmatpush1.msra.mxu0 0.0
    %615 = vmatprep.subr.mxu0 0.0
    %616 = vmatpush1.msra.mxu0 0.0
    %617 = vmatprep.subr.mxu0 0.0
    %618 = vmatpush1.msra.mxu0 0.0
    %619 = vmatprep.mubr.f32.mxu0 0.0
    %620 = vmatmul.mubr.f32.gmra.mrb[0].mxu0 %v105
    %v621 = vpop.f32.mrb[0].mxu0
    %v622 = vadd.f32 %v551, %v621
    %v623 = vpop.f32.mrb[0].mxu0
    %v624 = vadd.f32 %v553, %v623
    %625 = vdwg.mxu0
    %v626 = vmax.f32 %v622, 0.0
    %v627 = vmax.f32 %v624, 0.0
    %v628 = vld [vmem:[#allocation7] sm:$0xff]
    %v629 = vld [vmem:[#allocation7 + $0x8] sm:$0xff]
    %v630 = vld [vmem:[#allocation7 + $0x10] sm:$0xff]
    %v631 = vld [vmem:[#allocation7 + $0x18] sm:$0xff]
    %v632 = vld [vmem:[#allocation7 + $0x20] sm:$0xff]
    %v633 = vld [vmem:[#allocation7 + $0x28] sm:$0xff]
    %v634 = vld [vmem:[#allocation7 + $0x30] sm:$0xff]
    %v635 = vld [vmem:[#allocation7 + $0x38] sm:$0xff]
    %v636 = vld [vmem:[#allocation7 + $0x40] sm:$0xff]
    %v637 = vld [vmem:[#allocation7 + $0x48] sm:$0xff]
    %v638 = vld [vmem:[#allocation7 + $0x50] sm:$0xff]
    %v639 = vld [vmem:[#allocation7 + $0x58] sm:$0xff]
    %v640 = vld [vmem:[#allocation7 + $0x60] sm:$0xff]
    %v641 = vld [vmem:[#allocation7 + $0x68] sm:$0xff]
    %v642 = vld [vmem:[#allocation7 + $0x70] sm:$0xff]
    %v643 = vld [vmem:[#allocation7 + $0x78] sm:$0xff]
    %v644 = vld [vmem:[#allocation7 + $0x80] sm:$0xff]
    %v645 = vld [vmem:[#allocation7 + $0x88] sm:$0xff]
    %v646 = vld [vmem:[#allocation7 + $0x90] sm:$0xff]
    %v647 = vld [vmem:[#allocation7 + $0x98] sm:$0xff]
    %v648 = vld [vmem:[#allocation7 + $0xa0] sm:$0xff]
    %v649 = vld [vmem:[#allocation7 + $0xa8] sm:$0xff]
    %v650 = vld [vmem:[#allocation7 + $0xb0] sm:$0xff]
    %v651 = vld [vmem:[#allocation7 + $0xb8] sm:$0xff]
    %v652 = vld [vmem:[#allocation7 + $0xc0] sm:$0xff]
    %v653 = vld [vmem:[#allocation7 + $0xc8] sm:$0xff]
    %v654 = vld [vmem:[#allocation7 + $0xd0] sm:$0xff]
    %v655 = vld [vmem:[#allocation7 + $0xd8] sm:$0xff]
    %v656 = vld [vmem:[#allocation7 + $0xe0] sm:$0xff]
    %v657 = vld [vmem:[#allocation7 + $0xe8] sm:$0xff]
    %v658 = vld [vmem:[#allocation7 + $0xf0] sm:$0xff]
    %v659 = vld [vmem:[#allocation7 + $0xf8] sm:$0xff]
    %v660 = vld [vmem:[%s4] sm:$0x1]
    %v662 = vlaneseq
    %v663 = vshrl.u32 %v662, 7
    %v664 = vsub.s32 0, %v663
    %v665 = vrot.slane %v660, %v664
    %667 = vmatprep.subr.mxu0 0.0
    %668 = vmatpush1.msra.mxu0 %v628
    %669 = vmatprep.subr.mxu0 0.0
    %670 = vmatpush1.msra.mxu0 %v629
    %671 = vmatprep.subr.mxu0 0.0
    %672 = vmatpush1.msra.mxu0 %v630
    %673 = vmatprep.subr.mxu0 0.0
    %674 = vmatpush1.msra.mxu0 %v631
    %675 = vmatprep.subr.mxu0 0.0
    %676 = vmatpush1.msra.mxu0 %v632
    %677 = vmatprep.subr.mxu0 0.0
    %678 = vmatpush1.msra.mxu0 %v633
    %679 = vmatprep.subr.mxu0 0.0
    %680 = vmatpush1.msra.mxu0 %v634
    %681 = vmatprep.subr.mxu0 0.0
    %682 = vmatpush1.msra.mxu0 %v635
    %683 = vmatprep.subr.mxu0 0.0
    %684 = vmatpush1.msra.mxu0 %v636
    %685 = vmatprep.subr.mxu0 0.0
    %686 = vmatpush1.msra.mxu0 %v637
    %687 = vmatprep.subr.mxu0 0.0
    %688 = vmatpush1.msra.mxu0 %v638
    %689 = vmatprep.subr.mxu0 0.0
    %690 = vmatpush1.msra.mxu0 %v639
    %691 = vmatprep.subr.mxu0 0.0
    %692 = vmatpush1.msra.mxu0 %v640
    %693 = vmatprep.subr.mxu0 0.0
    %694 = vmatpush1.msra.mxu0 %v641
    %695 = vmatprep.subr.mxu0 0.0
    %696 = vmatpush1.msra.mxu0 %v642
    %697 = vmatprep.subr.mxu0 0.0
    %698 = vmatpush1.msra.mxu0 %v643
    %699 = vmatprep.subr.mxu0 0.0
    %700 = vmatpush1.msra.mxu0 %v644
    %701 = vmatprep.subr.mxu0 0.0
    %702 = vmatpush1.msra.mxu0 %v645
    %703 = vmatprep.subr.mxu0 0.0
    %704 = vmatpush1.msra.mxu0 %v646
    %705 = vmatprep.subr.mxu0 0.0
    %706 = vmatpush1.msra.mxu0 %v647
    %707 = vmatprep.subr.mxu0 0.0
    %708 = vmatpush1.msra.mxu0 %v648
    %709 = vmatprep.subr.mxu0 0.0
    %710 = vmatpush1.msra.mxu0 %v649
    %711 = vmatprep.subr.mxu0 0.0
    %712 = vmatpush1.msra.mxu0 %v650
    %713 = vmatprep.subr.mxu0 0.0
    %714 = vmatpush1.msra.mxu0 %v651
    %715 = vmatprep.subr.mxu0 0.0
    %716 = vmatpush1.msra.mxu0 %v652
    %717 = vmatprep.subr.mxu0 0.0
    %718 = vmatpush1.msra.mxu0 %v653
    %719 = vmatprep.subr.mxu0 0.0
    %720 = vmatpush1.msra.mxu0 %v654
    %721 = vmatprep.subr.mxu0 0.0
    %722 = vmatpush1.msra.mxu0 %v655
    %723 = vmatprep.subr.mxu0 0.0
    %724 = vmatpush1.msra.mxu0 %v656
    %725 = vmatprep.subr.mxu0 0.0
    %726 = vmatpush1.msra.mxu0 %v657
    %727 = vmatprep.subr.mxu0 0.0
    %728 = vmatpush1.msra.mxu0 %v658
    %729 = vmatprep.subr.mxu0 0.0
    %730 = vmatpush1.msra.mxu0 %v659
    %731 = vmatprep.mubr.f32.mxu0 %v627
    %732 = vmatmul.mubr.f32.gmra.mrb[0].mxu0 %v626
    %v733 = vpop.f32.mrb[0].mxu0
    %v734 = vadd.f32 %v665, %v733
    %v735 = vpop.f32.mrb[0].mxu0
    %736 = vdwg.mxu0
    %v737 = vmax.f32 %v734, 0.0
    %v738 = vld [vmem:[#allocation8] sm:$0xff]
    %v739 = vld [vmem:[#allocation8 + $0x8] sm:$0xff]
    %v740 = vld [vmem:[#allocation8 + $0x10] sm:$0xff]
    %v741 = vld [vmem:[#allocation8 + $0x18] sm:$0xff]
    %v742 = vld [vmem:[#allocation8 + $0x20] sm:$0xff]
    %v743 = vld [vmem:[#allocation8 + $0x28] sm:$0xff]
    %v744 = vld [vmem:[#allocation8 + $0x30] sm:$0xff]
    %v745 = vld [vmem:[#allocation8 + $0x38] sm:$0xff]
    %v746 = vld [vmem:[#allocation8 + $0x40] sm:$0xff]
    %v747 = vld [vmem:[#allocation8 + $0x48] sm:$0xff]
    %v748 = vld [vmem:[#allocation8 + $0x50] sm:$0xff]
    %v749 = vld [vmem:[#allocation8 + $0x58] sm:$0xff]
    %v750 = vld [vmem:[#allocation8 + $0x60] sm:$0xff]
    %v751 = vld [vmem:[#allocation8 + $0x68] sm:$0xff]
    %v752 = vld [vmem:[#allocation8 + $0x70] sm:$0xff]
    %v753 = vld [vmem:[#allocation8 + $0x78] sm:$0xff]
    %v754 = vld [vmem:[%s6] sm:$0x1]
    %v756 = vlaneseq
    %v757 = vshrl.u32 %v756, 7
    %v758 = vsub.s32 0, %v757
    %v759 = vrot.slane %v754, %v758
    %761 = vmatprep.subr.mxu0 0.0
    %762 = vmatpush1.msra.mxu0 %v738
    %763 = vmatprep.subr.mxu0 0.0
    %764 = vmatpush1.msra.mxu0 %v739
    %765 = vmatprep.subr.mxu0 0.0
    %766 = vmatpush1.msra.mxu0 %v740
    %767 = vmatprep.subr.mxu0 0.0
    %768 = vmatpush1.msra.mxu0 %v741
    %769 = vmatprep.subr.mxu0 0.0
    %770 = vmatpush1.msra.mxu0 %v742
    %771 = vmatprep.subr.mxu0 0.0
    %772 = vmatpush1.msra.mxu0 %v743
    %773 = vmatprep.subr.mxu0 0.0
    %774 = vmatpush1.msra.mxu0 %v744
    %775 = vmatprep.subr.mxu0 0.0
    %776 = vmatpush1.msra.mxu0 %v745
    %777 = vmatprep.subr.mxu0 0.0
    %778 = vmatpush1.msra.mxu0 %v746
    %779 = vmatprep.subr.mxu0 0.0
    %780 = vmatpush1.msra.mxu0 %v747
    %781 = vmatprep.subr.mxu0 0.0
    %782 = vmatpush1.msra.mxu0 %v748
    %783 = vmatprep.subr.mxu0 0.0
    %784 = vmatpush1.msra.mxu0 %v749
    %785 = vmatprep.subr.mxu0 0.0
    %786 = vmatpush1.msra.mxu0 %v750
    %787 = vmatprep.subr.mxu0 0.0
    %788 = vmatpush1.msra.mxu0 %v751
    %789 = vmatprep.subr.mxu0 0.0
    %790 = vmatpush1.msra.mxu0 %v752
    %791 = vmatprep.subr.mxu0 0.0
    %792 = vmatpush1.msra.mxu0 %v753
    %793 = vmatprep.subr.mxu0 0.0
    %794 = vmatpush1.msra.mxu0 0.0
    %795 = vmatprep.subr.mxu0 0.0
    %796 = vmatpush1.msra.mxu0 0.0
    %797 = vmatprep.subr.mxu0 0.0
    %798 = vmatpush1.msra.mxu0 0.0
    %799 = vmatprep.subr.mxu0 0.0
    %800 = vmatpush1.msra.mxu0 0.0
    %801 = vmatprep.subr.mxu0 0.0
    %802 = vmatpush1.msra.mxu0 0.0
    %803 = vmatprep.subr.mxu0 0.0
    %804 = vmatpush1.msra.mxu0 0.0
    %805 = vmatprep.subr.mxu0 0.0
    %806 = vmatpush1.msra.mxu0 0.0
    %807 = vmatprep.subr.mxu0 0.0
    %808 = vmatpush1.msra.mxu0 0.0
    %809 = vmatprep.subr.mxu0 0.0
    %810 = vmatpush1.msra.mxu0 0.0
    %811 = vmatprep.subr.mxu0 0.0
    %812 = vmatpush1.msra.mxu0 0.0
    %813 = vmatprep.subr.mxu0 0.0
    %814 = vmatpush1.msra.mxu0 0.0
    %815 = vmatprep.subr.mxu0 0.0
    %816 = vmatpush1.msra.mxu0 0.0
    %817 = vmatprep.subr.mxu0 0.0
    %818 = vmatpush1.msra.mxu0 0.0
    %819 = vmatprep.subr.mxu0 0.0
    %820 = vmatpush1.msra.mxu0 0.0
    %821 = vmatprep.subr.mxu0 0.0
    %822 = vmatpush1.msra.mxu0 0.0
    %823 = vmatprep.subr.mxu0 0.0
    %824 = vmatpush1.msra.mxu0 0.0
    %825 = vmatprep.mubr.f32.mxu0 0.0
    %826 = vmatmul.mubr.f32.gmra.mrb[0].mxu0 %v737
    %v827 = vpop.f32.mrb[0].mxu0
    %v828 = vadd.f32 %v759, %v827
    %v829 = vpop.f32.mrb[0].mxu0
    %830 = vdwg.mxu0
    %v831 = vmax.f32 %v828, 0.0
    %v832 = vld [vmem:[#allocation10] sm:$0xff]
    %v833 = vld [vmem:[#allocation10 + $0x8] sm:$0xff]
    %v834 = vld [vmem:[#allocation10 + $0x10] sm:$0xff]
    %v835 = vld [vmem:[#allocation10 + $0x18] sm:$0xff]
    %v836 = vld [vmem:[#allocation10 + $0x20] sm:$0xff]
    %v837 = vld [vmem:[#allocation10 + $0x28] sm:$0xff]
    %v838 = vld [vmem:[#allocation10 + $0x30] sm:$0xff]
    %v839 = vld [vmem:[#allocation10 + $0x38] sm:$0xff]
    %v840 = vld [vmem:[#allocation10 + $0x40] sm:$0xff]
    %v841 = vld [vmem:[#allocation10 + $0x48] sm:$0xff]
    %v842 = vld [vmem:[#allocation10 + $0x50] sm:$0xff]
    %v843 = vld [vmem:[#allocation10 + $0x58] sm:$0xff]
    %v844 = vld [vmem:[#allocation10 + $0x60] sm:$0xff]
    %v845 = vld [vmem:[#allocation10 + $0x68] sm:$0xff]
    %v846 = vld [vmem:[#allocation10 + $0x70] sm:$0xff]
    %v847 = vld [vmem:[#allocation10 + $0x78] sm:$0xff]
    %v848 = vld [vmem:[%s8] sm:$0x1]
    %v850 = vlaneseq
    %v851 = vshrl.u32 %v850, 7
    %v852 = vsub.s32 0, %v851
    %v853 = vrot.slane %v848, %v852
    %855 = vmatprep.subr.mxu0 0.0
    %856 = vmatpush1.msra.mxu0 %v832
    %857 = vmatprep.subr.mxu0 0.0
    %858 = vmatpush1.msra.mxu0 %v833
    %859 = vmatprep.subr.mxu0 0.0
    %860 = vmatpush1.msra.mxu0 %v834
    %861 = vmatprep.subr.mxu0 0.0
    %862 = vmatpush1.msra.mxu0 %v835
    %863 = vmatprep.subr.mxu0 0.0
    %864 = vmatpush1.msra.mxu0 %v836
    %865 = vmatprep.subr.mxu0 0.0
    %866 = vmatpush1.msra.mxu0 %v837
    %867 = vmatprep.subr.mxu0 0.0
    %868 = vmatpush1.msra.mxu0 %v838
    %869 = vmatprep.subr.mxu0 0.0
    %870 = vmatpush1.msra.mxu0 %v839
    %871 = vmatprep.subr.mxu0 0.0
    %872 = vmatpush1.msra.mxu0 %v840
    %873 = vmatprep.subr.mxu0 0.0
    %874 = vmatpush1.msra.mxu0 %v841
    %875 = vmatprep.subr.mxu0 0.0
    %876 = vmatpush1.msra.mxu0 %v842
    %877 = vmatprep.subr.mxu0 0.0
    %878 = vmatpush1.msra.mxu0 %v843
    %879 = vmatprep.subr.mxu0 0.0
    %880 = vmatpush1.msra.mxu0 %v844
    %881 = vmatprep.subr.mxu0 0.0
    %882 = vmatpush1.msra.mxu0 %v845
    %883 = vmatprep.subr.mxu0 0.0
    %884 = vmatpush1.msra.mxu0 %v846
    %885 = vmatprep.subr.mxu0 0.0
    %886 = vmatpush1.msra.mxu0 %v847
    %887 = vmatprep.subr.mxu0 0.0
    %888 = vmatpush1.msra.mxu0 0.0
    %889 = vmatprep.subr.mxu0 0.0
    %890 = vmatpush1.msra.mxu0 0.0
    %891 = vmatprep.subr.mxu0 0.0
    %892 = vmatpush1.msra.mxu0 0.0
    %893 = vmatprep.subr.mxu0 0.0
    %894 = vmatpush1.msra.mxu0 0.0
    %895 = vmatprep.subr.mxu0 0.0
    %896 = vmatpush1.msra.mxu0 0.0
    %897 = vmatprep.subr.mxu0 0.0
    %898 = vmatpush1.msra.mxu0 0.0
    %899 = vmatprep.subr.mxu0 0.0
    %900 = vmatpush1.msra.mxu0 0.0
    %901 = vmatprep.subr.mxu0 0.0
    %902 = vmatpush1.msra.mxu0 0.0
    %903 = vmatprep.subr.mxu0 0.0
    %904 = vmatpush1.msra.mxu0 0.0
    %905 = vmatprep.subr.mxu0 0.0
    %906 = vmatpush1.msra.mxu0 0.0
    %907 = vmatprep.subr.mxu0 0.0
    %908 = vmatpush1.msra.mxu0 0.0
    %909 = vmatprep.subr.mxu0 0.0
    %910 = vmatpush1.msra.mxu0 0.0
    %911 = vmatprep.subr.mxu0 0.0
    %912 = vmatpush1.msra.mxu0 0.0
    %913 = vmatprep.subr.mxu0 0.0
    %914 = vmatpush1.msra.mxu0 0.0
    %915 = vmatprep.subr.mxu0 0.0
    %916 = vmatpush1.msra.mxu0 0.0
    %917 = vmatprep.subr.mxu0 0.0
    %918 = vmatpush1.msra.mxu0 0.0
    %919 = vmatprep.mubr.f32.mxu0 0.0
    %920 = vmatmul.mubr.f32.gmra.mrb[0].mxu0 %v831
    %v921 = vpop.f32.mrb[0].mxu0
    %v922 = vadd.f32 %v853, %v921
    %v923 = vpop.f32.mrb[0].mxu0
    %924 = vdwg.mxu0
    %925 = vmax.xlane.f32.xlu0 %v922
    %v926 = vpop.xlane.xlu0 %925
    %v927 = vsub.f32 %v922, %v926
    %v928 = vmul.f32 %v927, 1.442695
    %v929 = vpow.pop %v928
    %930 = vadd.xlane.f32.xlu0 %v929
    %v931 = vpop.xlane.xlu0 %930
    %v932 = vlog2.pop %v931
    %v933 = vmul.f32 %v932, 0.6931472
    %v934 = vsub.f32 %v927, %v933
    %935 = vst [vmem:[#allocation11] sm:$0xff] %v934
    // Predicated region
    $region58: #{tpu_custom_call.1} parent=1 // pred_check
      _
    $region59: #{tpu_custom_call.1} parent=1 // pred_check_branch
      %937 = sbr.rel (0) target = $region61
    $region60: #{tpu_custom_call.1} parent=1 // pred_region
      %s939 = ssub.s32 128, 128
      %940 = vsyncadd [#allocation4], %s939
      %s942 = sshll.u32 [#allocation11], 4
      %s943 = int_to_ptr.vmem [resolvable:$true] %s942
      %945 = dma.vmem_to_hbm [thread:$0]  %s943, 128, %s9, [#allocation4]
    $region61: #{tpu_custom_call.1} parent=1 // pred_fallthru
      _
    // Predicated region
    $region62: #{tpu_custom_call.1} parent=1 // pred_check
      _
    $region63: #{tpu_custom_call.1} parent=1 // pred_check_branch
      %947 = sbr.rel (0) target = $region65
    $region64: #{tpu_custom_call.1} parent=1 // pred_region
      %948 = dma.done [#allocation4], 128
    $region65: #{tpu_custom_call.1} parent=1 // pred_fallthru
      _
    %949 = vsyncpa [#allocation3], 1
    %950 = vsyncpa [#allocation6], 1
    %951 = vsyncpa [#allocation9], 1
    %952 = vsyncpa [#allocation4], 1

</llo_original>
